<compile_context>
chip_gen: v5e
topology: v5e:2x2
jax: 0.10.0
libtpu: 0.0.40
codegen_flags: <defaults>
</compile_context>

<pallas_src>
import jax
import jax.numpy as jnp
from jax import lax
from jax.experimental import pallas as pl
from jax.experimental.pallas import tpu as pltpu

LN_EPS = 1e-5  # nn.LayerNorm default


def patch_merging_kernel(x_ref, w_ref, b_ref, o_ref):
    # x_ref: (2, TM, D)  -- the two sequence halves of this row tile
    # w_ref: (2D, D)     -- gamma-folded reduction weight
    # b_ref: (1, D)      -- beta @ W   (precomputed output bias)
    # o_ref: (TM, D)
    h0 = x_ref[0].astype(jnp.float32)
    h1 = x_ref[1].astype(jnp.float32)
    d = h0.shape[-1]
    inv_width = 1.0 / (2.0 * d)

    # LayerNorm stats over the virtual (TM, 2D) merged row, single pass.
    s1 = jnp.sum(h0, axis=-1, keepdims=True) + jnp.sum(h1, axis=-1, keepdims=True)
    s2 = (jnp.sum(h0 * h0, axis=-1, keepdims=True)
          + jnp.sum(h1 * h1, axis=-1, keepdims=True))
    mean = s1 * inv_width
    var = jnp.maximum(s2 * inv_width - mean * mean, 0.0)
    inv = lax.rsqrt(var + LN_EPS)                                   # EUP
    n0 = (h0 - mean) * inv
    n1 = (h1 - mean) * inv

    mxu_dtype = w_ref.dtype
    if d < 256:
        # Single K=2D contraction: full systolic depth on v6e/v7x MXUs.
        n = jnp.concatenate([n0, n1], axis=-1).astype(mxu_dtype)
        acc = jnp.dot(n, w_ref[...], preferred_element_type=jnp.float32)
    else:
        # Split-K over the two feature halves (static, tile-aligned ref views).
        acc = jnp.dot(n0.astype(mxu_dtype), w_ref[:d, :],
                      preferred_element_type=jnp.float32)
        acc = acc + jnp.dot(n1.astype(mxu_dtype), w_ref[d:, :],
                            preferred_element_type=jnp.float32)

    o_ref[...] = (acc + b_ref[...].astype(jnp.float32)).astype(o_ref.dtype)


def prepare_params(gamma, beta, w, mxu_dtype=None):
    """One-time parameter fold (call at init, not per forward).

    LayerNorm(y; gamma, beta) @ W == ((y - mu) * rsqrt(var + eps)) @ (gamma[:,None] * W) + beta @ W
    `w` is the (2D, D) matrix applied on the right (i.e. nn.Linear.weight.T).
    On v5e pass mxu_dtype=jnp.bfloat16 to feed the MXU bf16 (f32 accumulation).
    """
    dtype = w.dtype if mxu_dtype is None else mxu_dtype
    gf = gamma.astype(jnp.float32)
    wf = w.astype(jnp.float32)
    w_folded = (gf[:, None] * wf).astype(dtype)
    bias = (beta.astype(jnp.float32) @ wf).reshape(1, -1)           # f32 (1, D)
    return w_folded, bias


def _pick_row_tile(th, d, itemsize):
    """Row tile over the halved sequence axis + per-step VMEM estimate."""
    # ~1 MiB of x per half per step amortizes the ~0.35 us per-step overhead.
    target = max(256, (1 << 20) // max(d * itemsize, 1))

    def step_vmem(tm):
        # double-buffered (2,TM,D) input + (TM,D) output + (2D+1,D) consts,
        # plus ~5 (TM,D) f32 LayerNorm temporaries.
        return (6 * tm * d * itemsize
                + 2 * (2 * d + 1) * d * itemsize
                + 5 * tm * d * 4)

    tm = target
    while tm > 256 and step_vmem(tm) > (14 << 20):   # fit v5e's 16 MiB default
        tm //= 2
    if tm >= th:
        return th, step_vmem(th)                     # full-extent block (allowed)
    tm = max(8, (tm // 8) * 8)                       # sublane-aligned
    return tm, step_vmem(tm)


def patch_merging(x, w_folded, bias):
    """x: (B, T, D), T even; w_folded: (2D, D); bias: (1, D) from prepare_params.

    Returns (B, T//2, D), matching PatchMerging.forward.
    """
    B, T, D = x.shape
    assert T % 2 == 0, "sequence length must be even"
    Th = T // 2
    itemsize = jnp.dtype(x.dtype).itemsize

    # 'b (p t) d -> b t (p d)': free reshape; the p axis stays a real array
    # axis so the kernel DMAs both halves of each row tile directly from x.
    x4 = x.reshape(B, 2, Th, D)

    TM, step_vmem = _pick_row_tile(Th, D, itemsize)
    grid = (B, pl.cdiv(Th, TM))

    x_spec = pl.BlockSpec((None, 2, TM, D), lambda b, i: (b, 0, i, 0))
    w_spec = pl.BlockSpec((2 * D, D), lambda b, i: (0, 0))
    b_spec = pl.BlockSpec((1, D), lambda b, i: (0, 0))
    o_spec = pl.BlockSpec((None, TM, D), lambda b, i: (b, i, 0))

    M = B * Th
    cost = pl.CostEstimate(
        flops=4 * M * D * D + 8 * M * D,
        transcendentals=M,
        bytes_accessed=(x.size * itemsize
                        + M * D * itemsize
                        + w_folded.size * jnp.dtype(w_folded.dtype).itemsize
                        + bias.size * jnp.dtype(bias.dtype).itemsize),
    )

    # Only raise the scoped-VMEM limit when the default (16 MiB on v5e) would
    # not hold the chosen tiles; stay well under v7x's 64 MiB physical VMEM.
    vmem_limit = None
    if step_vmem > (14 << 20):
        vmem_limit = min(int(step_vmem * 3 // 2), 32 << 20)

    out = pl.pallas_call(
        patch_merging_kernel,
        out_shape=jax.ShapeDtypeStruct((B, Th, D), x.dtype),
        grid_spec=pltpu.PrefetchScalarGridSpec(
            num_scalar_prefetch=0,
            grid=grid,
            in_specs=[x_spec, w_spec, b_spec],
            out_specs=o_spec,
        ),
        compiler_params=pltpu.CompilerParams(
            dimension_semantics=("parallel", "parallel"),
            vmem_limit_bytes=vmem_limit,
        ),
        cost_estimate=cost,
    )(x4, w_folded, bias)

    return out


def reference(x, gamma, beta, w):
    B, T, D = x.shape
    Th = T // 2
    y = jnp.concatenate([x[:, :Th], x[:, Th:]], axis=-1)   # 'b (p t) d -> b t (p d)'
    mean = jnp.mean(y, axis=-1, keepdims=True)
    var = jnp.mean((y - mean) ** 2, axis=-1, keepdims=True)
    yn = (y - mean) / jnp.sqrt(var + LN_EPS) * gamma + beta
    return jnp.einsum("btk,kd->btd", yn, w)


if __name__ == "__main__":
    # Small shapes consistent with the module: batch=2, seq (#patches)=16,
    # d_model=128 (multiple of 128 so every block is lane-dense).
    B, T, D = 2, 16, 128

    key = jax.random.PRNGKey(0)
    kx, kw, kg, kb = jax.random.split(key, 4)

    x = jax.random.normal(kx, (B, T, D), dtype=jnp.float32)
    w = jax.random.normal(kw, (2 * D, D), dtype=jnp.float32) * 0.02   # Linear(2D->D, no bias), = weight.T
    gamma = 1.0 + 0.1 * jax.random.normal(kg, (2 * D,), dtype=jnp.float32)
    beta = 0.1 * jax.random.normal(kb, (2 * D,), dtype=jnp.float32)

    w_folded, bias = prepare_params(gamma, beta, w)        # one-time param fold
    out = jax.jit(patch_merging)(x, w_folded, bias)
    out = jax.block_until_ready(out)

    ref = reference(x, gamma, beta, w)
    assert out.shape == (B, T // 2, D)
    max_err = float(jnp.max(jnp.abs(out - ref)))
    assert jnp.allclose(out, ref, atol=1e-3, rtol=1e-3), max_err

    print("KERNEL_OK")
</pallas_src>

<mosaic_0001>
module attributes {stable_mosaic.version = 11 : i64} {
  func.func @patch_merging_kernel(%arg0: i32, %arg1: i32, %arg2: memref<1x2x8x128xf32, #tpu.memory_space<vmem>>, %arg3: memref<256x128xf32, #tpu.memory_space<vmem>>, %arg4: memref<1x128xf32, #tpu.memory_space<vmem>>, %arg5: memref<1x8x128xf32, #tpu.memory_space<vmem>>) attributes {dimension_semantics = [#tpu.dimension_semantics<parallel>, #tpu.dimension_semantics<parallel>], iteration_bounds = array<i64: 2, 1>, scalar_prefetch = 0 : i64, scratch_operands = 0 : i64, tpu.core_type = #tpu.core_type<tc>, window_params = [{transform_indices = @transform_0, window_bounds = array<i64: 1, 2, 8, 128>}, {pipeline_mode = #tpu.pipeline_mode<synchronous>, transform_indices = @transform_1, window_bounds = array<i64: 256, 128>}, {pipeline_mode = #tpu.pipeline_mode<synchronous>, transform_indices = @transform_2, window_bounds = array<i64: 1, 128>}, {transform_indices = @transform_3, window_bounds = array<i64: 1, 8, 128>}]} {
    %c0 = arith.constant 0 : index
    %c0_0 = arith.constant 0 : index
    %c0_1 = arith.constant 0 : index
    %c0_2 = arith.constant 0 : index
    %0 = vector.load %arg2[%c0, %c0_0, %c0_1, %c0_2] : memref<1x2x8x128xf32, #tpu.memory_space<vmem>>, vector<1x1x8x128xf32>
    %1 = vector.shape_cast %0 : vector<1x1x8x128xf32> to vector<8x128xf32>
    %c0_3 = arith.constant 0 : index
    %c1 = arith.constant 1 : index
    %c0_4 = arith.constant 0 : index
    %c0_5 = arith.constant 0 : index
    %2 = vector.load %arg2[%c0_3, %c1, %c0_4, %c0_5] : memref<1x2x8x128xf32, #tpu.memory_space<vmem>>, vector<1x1x8x128xf32>
    %3 = vector.shape_cast %2 : vector<1x1x8x128xf32> to vector<8x128xf32>
    %cst = arith.constant dense<0.000000e+00> : vector<8xf32>
    %4 = vector.multi_reduction <add>, %1, %cst [1] : vector<8x128xf32> to vector<8xf32>
    %5 = vector.shape_cast %4 : vector<8xf32> to vector<8x1xf32>
    %cst_6 = arith.constant dense<0.000000e+00> : vector<8xf32>
    %6 = vector.multi_reduction <add>, %3, %cst_6 [1] : vector<8x128xf32> to vector<8xf32>
    %7 = vector.shape_cast %6 : vector<8xf32> to vector<8x1xf32>
    %8 = arith.addf %5, %7 : vector<8x1xf32>
    %9 = arith.mulf %1, %1 : vector<8x128xf32>
    %cst_7 = arith.constant dense<0.000000e+00> : vector<8xf32>
    %10 = vector.multi_reduction <add>, %9, %cst_7 [1] : vector<8x128xf32> to vector<8xf32>
    %11 = vector.shape_cast %10 : vector<8xf32> to vector<8x1xf32>
    %12 = arith.mulf %3, %3 : vector<8x128xf32>
    %cst_8 = arith.constant dense<0.000000e+00> : vector<8xf32>
    %13 = vector.multi_reduction <add>, %12, %cst_8 [1] : vector<8x128xf32> to vector<8xf32>
    %14 = vector.shape_cast %13 : vector<8xf32> to vector<8x1xf32>
    %15 = arith.addf %11, %14 : vector<8x1xf32>
    %cst_9 = arith.constant 3.906250e-03 : f32
    %16 = vector.broadcast %cst_9 : f32 to vector<8x1xf32>
    %17 = arith.mulf %8, %16 : vector<8x1xf32>
    %cst_10 = arith.constant 3.906250e-03 : f32
    %18 = vector.broadcast %cst_10 : f32 to vector<8x1xf32>
    %19 = arith.mulf %15, %18 : vector<8x1xf32>
    %20 = arith.mulf %17, %17 : vector<8x1xf32>
    %21 = arith.subf %19, %20 : vector<8x1xf32>
    %cst_11 = arith.constant 0.000000e+00 : f32
    %22 = vector.broadcast %cst_11 : f32 to vector<8x1xf32>
    %23 = arith.maximumf %21, %22 : vector<8x1xf32>
    %cst_12 = arith.constant 9.99999974E-6 : f32
    %24 = vector.broadcast %cst_12 : f32 to vector<8x1xf32>
    %25 = arith.addf %23, %24 : vector<8x1xf32>
    %26 = math.rsqrt %25 : vector<8x1xf32>
    %27 = vector.broadcast %17 : vector<8x1xf32> to vector<8x128xf32>
    %28 = arith.subf %1, %27 : vector<8x128xf32>
    %29 = vector.broadcast %26 : vector<8x1xf32> to vector<8x128xf32>
    %30 = arith.mulf %28, %29 : vector<8x128xf32>
    %31 = vector.broadcast %17 : vector<8x1xf32> to vector<8x128xf32>
    %32 = arith.subf %3, %31 : vector<8x128xf32>
    %33 = vector.broadcast %26 : vector<8x1xf32> to vector<8x128xf32>
    %34 = arith.mulf %32, %33 : vector<8x128xf32>
    %35 = tpu.concatenate %30, %34 in 1 : vector<8x128xf32>, vector<8x128xf32> -> vector<8x256xf32>
    %c0_13 = arith.constant 0 : index
    %c0_14 = arith.constant 0 : index
    %36 = vector.load %arg3[%c0_13, %c0_14] : memref<256x128xf32, #tpu.memory_space<vmem>>, vector<256x128xf32>
    %cst_15 = arith.constant dense<0.000000e+00> : vector<8x128xf32>
    %37 = tpu.matmul %35, %36, %cst_15 {dimension_numbers = #tpu.dot_dimension_numbers<[1], [0], [0], [1], [0, 0, 1, 1], [], []>} : vector<8x256xf32>, vector<256x128xf32>, vector<8x128xf32> -> vector<8x128xf32>
    %c0_16 = arith.constant 0 : index
    %c0_17 = arith.constant 0 : index
    %38 = vector.load %arg4[%c0_16, %c0_17] : memref<1x128xf32, #tpu.memory_space<vmem>>, vector<1x128xf32>
    %39 = vector.broadcast %38 : vector<1x128xf32> to vector<8x128xf32>
    %40 = arith.addf %37, %39 : vector<8x128xf32>
    %c0_18 = arith.constant 0 : index
    %c0_19 = arith.constant 0 : index
    %c0_20 = arith.constant 0 : index
    %41 = vector.load %arg5[%c0_18, %c0_19, %c0_20] : memref<1x8x128xf32, #tpu.memory_space<vmem>>, vector<1x8x128xf32>
    %42 = vector.shape_cast %41 : vector<1x8x128xf32> to vector<8x128xf32>
    %43 = vector.shape_cast %40 : vector<8x128xf32> to vector<1x8x128xf32>
    tpu.vector_store %arg5[%c0_18, %c0_19, %c0_20], %43 {strides = array<i32>} : memref<1x8x128xf32, #tpu.memory_space<vmem>>, vector<1x8x128xf32>,
    return
  }
  func.func @transform_0(%arg0: i32, %arg1: i32) -> (i32, i32, i32, i32) {
    %c0_i32 = arith.constant 0 : i32
    %c0_i32_0 = arith.constant 0 : i32
    %c0_i32_1 = arith.constant 0 : i32
    return %arg0, %c0_i32, %arg1, %c0_i32_0 : i32, i32, i32, i32
  }
  func.func @transform_1(%arg0: i32, %arg1: i32) -> (i32, i32) {
    %c0_i32 = arith.constant 0 : i32
    %c0_i32_0 = arith.constant 0 : i32
    %c0_i32_1 = arith.constant 0 : i32
    return %c0_i32, %c0_i32_0 : i32, i32
  }
  func.func @transform_2(%arg0: i32, %arg1: i32) -> (i32, i32) {
    %c0_i32 = arith.constant 0 : i32
    %c0_i32_0 = arith.constant 0 : i32
    %c0_i32_1 = arith.constant 0 : i32
    return %c0_i32, %c0_i32_0 : i32, i32
  }
  func.func @transform_3(%arg0: i32, %arg1: i32) -> (i32, i32, i32) {
    %c0_i32 = arith.constant 0 : i32
    %c0_i32_0 = arith.constant 0 : i32
    return %arg0, %arg1, %c0_i32 : i32, i32, i32
  }
}

</mosaic_0001>

<llo_original>
// kernel: patch_merging.1
$region0: #{patch_merging.1}
  #allocation0 [shape = 'u32[]', space=smem, size = 0x4, offset = 0x4, fixed_abs, tag = 'smem constant byte address 0x4 - core index']
  #allocation1 [shape = 'u32[72,128]{1,0:T(1,128)}', space=vmem, size = 0x9000, scoped, tag = 'internal scratch']
  %s0 = inlined_call_operand.hbm [shape: f32[2,2,8,128], index: 0, kind: input, shape index: {}]
  %s1 = inlined_call_operand.hbm [shape: f32[256,128], index: 1, kind: input, shape index: {}]
  %s2 = inlined_call_operand.vmem [shape: f32[1,128], index: 2, kind: input, shape index: {}]
  %s3 = inlined_call_operand.hbm [shape: f32[2,8,128], index: 3, kind: output, shape index: {}]
  %s4 = sld [smem:[#allocation0]]
  $region53: #{patch_merging.1} parent=0
    _
  %s6 = ssub.s32 1, %s4
  %s7 = scalar_select 0, %s6, %s4
  $region1: #{patch_merging.1} parent=0
    #allocation2 [shape = 'u8[16384]{0}', space=vmem, size = 0x4000, scoped, tag = 'input window, operand 0']
    #allocation3 [shape = 's32[2]{0}', space=sflag, size = 0x8, scoped, tag = 'scoped memory for patch_merging.1']
    #allocation4 [shape = 's32[2]{0}', space=sflag, size = 0x8, scoped, tag = 'scoped memory for patch_merging.1']
    #allocation5 [shape = 'u8[131072]{0}', space=vmem, size = 0x20000, scoped, tag = 'input window, operand 1, single buffered']
    #allocation6 [shape = 's32[1]{0}', space=sflag, size = 0x4, scoped, tag = 'scoped memory for patch_merging.1']
    #allocation7 [shape = 'u8[8192]{0}', space=vmem, size = 0x2000, scoped, tag = 'output window, operand 0']
    %8 = vsyncpa [#allocation3], 0
    %s9 = scalar_lea.sflag [#allocation3], 1
    %10 = vsyncpa %s9, 0
    %11 = vsyncpa [#allocation6], 0
    %12 = vsyncpa [#allocation4], 0
    %s13 = scalar_lea.sflag [#allocation4], 1
    %14 = vsyncpa %s13, 0
    loop: start=0, step=1, limit=4
    $region2: #{patch_merging.1} parent=1 // loop_pre_header
      _
    $region3: #{patch_merging.1} parent=1 // loop_header
      %s16 = sphi 0, %s20
      %p17 = scmp.ge.s32.totalorder %s16, 4
      %s23 = sphi 0, %s35
      %s24 = sphi 0, %s31
      %s25 = sphi 0, %s23
      %s26 = sphi 0, %s24
      %s27 = sphi 0, %s25
      %s28 = sphi 0, %s26
      %s40 = sphi 0, %s42
      %s43 = sphi 0, %s40
      %s44 = sphi 0, %s43
      %s60 = sphi 0, %s44
      %s64 = sphi 0, %s64
      %s66 = sphi 0, %s64
      %s67 = sphi 0, %s66
      %s81 = sphi 0, %s67
      %s85 = sphi 0, %s85
      %s87 = sphi 0, %s85
      %s88 = sphi 0, %s87
      %s102 = sphi 0, %s88
      %s110 = sphi 0, %s112
      %s113 = sphi 0, %s110
      %s114 = sphi 0, %s113
      %s130 = sphi 0, %s114
    $region4: #{patch_merging.1} parent=1 // loop_header_branch
      %19 = sbr.rel (%p17) target = $region8
    $region5: #{patch_merging.1} parent=1 // loop_body
      %s21 = ssub.s32 %s16, 1
      %s22 = ssub.s32 %s16, 2
      %s29 = sadd.s32 1, %s24
      %p30 = scmp.ge.s32.totalorder %s29, 1
      %s31 = scalar_select %p30, 0, %s29
      %s32 = sadd.s32 1, %s23
      %s33 = scalar_select %p30, %s32, %s23
      %p34 = scmp.ge.s32.totalorder %s33, 2
      %s35 = scalar_select %p34, 0, %s33
      %s36 = ssub.s32 %s23, %s35
      %s37 = ssub.s32 %s24, %s31
      %s38 = sor.u32 %s36, %s37
      %p39 = scmp.eq.s32.totalorder %s38, 0
      %s41 = sadd.s32 %s40, 1
      %s42 = scalar_select %p39, %s40, %s41
      %p45 = pneg %p39
      %p46 = scmp.eq.s32.totalorder %s16, 1
      %p47 = por %p45, %p46
      %p48 = scmp.ne.s32.totalorder %s40, %s43
      %p49 = scmp.eq.s32.totalorder %s16, 0
      %p50 = por %p48, %p49
      %p51 = scmp.ne.s32.totalorder %s40, %s43
      %p52 = scmp.eq.s32.totalorder %s21, 1
      %p53 = por %p51, %p52
      %p54 = scmp.ne.s32.totalorder %s43, %s44
      %p55 = scmp.eq.s32.totalorder %s21, 0
      %p56 = por %p54, %p55
      %p57 = scmp.ne.s32.totalorder %s43, %s44
      %p58 = scmp.eq.s32.totalorder %s22, 1
      %p59 = por %p57, %p58
      %p61 = scmp.ne.s32.totalorder %s44, %s60
      %p62 = scmp.eq.s32.totalorder %s22, 0
      %p63 = por %p61, %p62
      %s65 = sadd.s32 %s64, 1
      %p68 = scmp.eq.s32.totalorder %s16, 1
      %p69 = scmp.ne.s32.totalorder %s64, %s66
      %p70 = scmp.eq.s32.totalorder %s16, 0
      %p71 = por %p69, %p70
      %p72 = scmp.ne.s32.totalorder %s64, %s66
      %p73 = scmp.eq.s32.totalorder %s21, 1
      %p74 = por %p72, %p73
      %p75 = scmp.ne.s32.totalorder %s66, %s67
      %p76 = scmp.eq.s32.totalorder %s21, 0
      %p77 = por %p75, %p76
      %p78 = scmp.ne.s32.totalorder %s66, %s67
      %p79 = scmp.eq.s32.totalorder %s22, 1
      %p80 = por %p78, %p79
      %p82 = scmp.ne.s32.totalorder %s67, %s81
      %p83 = scmp.eq.s32.totalorder %s22, 0
      %p84 = por %p82, %p83
      %s86 = sadd.s32 %s85, 1
      %p89 = scmp.eq.s32.totalorder %s16, 1
      %p90 = scmp.ne.s32.totalorder %s85, %s87
      %p91 = scmp.eq.s32.totalorder %s16, 0
      %p92 = por %p90, %p91
      %p93 = scmp.ne.s32.totalorder %s85, %s87
      %p94 = scmp.eq.s32.totalorder %s21, 1
      %p95 = por %p93, %p94
      %p96 = scmp.ne.s32.totalorder %s87, %s88
      %p97 = scmp.eq.s32.totalorder %s21, 0
      %p98 = por %p96, %p97
      %p99 = scmp.ne.s32.totalorder %s87, %s88
      %p100 = scmp.eq.s32.totalorder %s22, 1
      %p101 = por %p99, %p100
      %p103 = scmp.ne.s32.totalorder %s88, %s102
      %p104 = scmp.eq.s32.totalorder %s22, 0
      %p105 = por %p103, %p104
      %s106 = ssub.s32 %s23, %s35
      %s107 = ssub.s32 %s24, %s31
      %s108 = sor.u32 %s106, %s107
      %p109 = scmp.eq.s32.totalorder %s108, 0
      %s111 = sadd.s32 %s110, 1
      %s112 = scalar_select %p109, %s110, %s111
      %p115 = pneg %p109
      %p116 = scmp.eq.s32.totalorder %s16, 1
      %p117 = por %p115, %p116
      %p118 = scmp.ne.s32.totalorder %s110, %s113
      %p119 = scmp.eq.s32.totalorder %s16, 0
      %p120 = por %p118, %p119
      %p121 = scmp.ne.s32.totalorder %s110, %s113
      %p122 = scmp.eq.s32.totalorder %s21, 1
      %p123 = por %p121, %p122
      %p124 = scmp.ne.s32.totalorder %s113, %s114
      %p125 = scmp.eq.s32.totalorder %s21, 0
      %p126 = por %p124, %p125
      %p127 = scmp.ne.s32.totalorder %s113, %s114
      %p128 = scmp.eq.s32.totalorder %s22, 1
      %p129 = por %p127, %p128
      %p131 = scmp.ne.s32.totalorder %s114, %s130
      %p132 = scmp.eq.s32.totalorder %s22, 0
      %p133 = por %p131, %p132
      %p134 = scmp.le.s32.totalorder 1, %s16
      %p135 = scmp.lt.s32.totalorder %s16, 3
      %p136 = pnand %p134, %p135
      %p137 = pneg %p136
      // Predicated region
      $region9: #{patch_merging.1} parent=5 // pred_check
        _
      $region10: #{patch_merging.1} parent=5 // pred_check_branch
        %139 = sbr.rel (%p136) target = $region12
      $region11: #{patch_merging.1} parent=5 // pred_region
        %s140 = ssub.s32 %s16, 1
        // Predicated region
        $region13: #{patch_merging.1} parent=11 // pred_check
          %p141 = pneg %p77
        $region14: #{patch_merging.1} parent=11 // pred_check_branch
          %143 = sbr.rel (%p141) target = $region16
        $region15: #{patch_merging.1} parent=11 // pred_region
          %145 = vsyncadd [#allocation6], 0
          %s146 = sshll.u32 %s1, 4
          %s147 = int_to_ptr.hbm [resolvable:$true] %s146
          %s148 = sshll.u32 [#allocation5], 4
          %s149 = int_to_ptr.vmem [resolvable:$true] %s148
          %154 = dma.hbm_to_vmem [thread:$0]  %s147, 4096, %s149, [#allocation6], 128, 128, 8
        $region16: #{patch_merging.1} parent=11 // pred_fallthru
          _
        // Predicated region
        $region17: #{patch_merging.1} parent=11 // pred_check
          %p155 = pneg %p98
        $region18: #{patch_merging.1} parent=11 // pred_check_branch
          %157 = sbr.rel (%p155) target = $region20
        $region19: #{patch_merging.1} parent=11 // pred_region
          _
        $region20: #{patch_merging.1} parent=11 // pred_fallthru
          _
      $region12: #{patch_merging.1} parent=5 // pred_fallthru
        _
      %p158 = scmp.lt.s32.totalorder %s16, 2
      // Predicated region
      $region21: #{patch_merging.1} parent=5 // pred_check
        %p159 = pneg %p158
      $region22: #{patch_merging.1} parent=5 // pred_check_branch
        %161 = sbr.rel (%p159) target = $region24
      $region23: #{patch_merging.1} parent=5 // pred_region
        // Predicated region
        $region25: #{patch_merging.1} parent=23 // pred_check
          %p162 = pneg %p50
        $region26: #{patch_merging.1} parent=23 // pred_check_branch
          %164 = sbr.rel (%p162) target = $region28
        $region27: #{patch_merging.1} parent=23 // pred_region
          %s165 = sand.u32 %s40, 1
          %s166 = scalar_lea.sflag [#allocation3], %s165
          %s167 = sand.u32 %s40, 1
          %s168 = smul.addr %s167, 16
          %s169 = scalar_lea.vmem [#allocation2], %s168
          %171 = vsyncadd %s166, 0
          %s172 = smul.addr %s23, 2
          %s173 = sadd.s32 %s24, %s172
          %s174 = smul.addr %s173, 8
          %s175 = scalar_lea.hbm %s0, %s174
          %s176 = sshll.u32 %s175, 4
          %s177 = int_to_ptr.hbm [resolvable:$true] %s176
          %s178 = sshll.u32 %s169, 4
          %s179 = int_to_ptr.vmem [resolvable:$true] %s178
          %184 = dma.hbm_to_vmem [thread:$0]  %s177, 256, %s179, %s166, 128, 128, 8
        $region28: #{patch_merging.1} parent=23 // pred_fallthru
          _
      $region24: #{patch_merging.1} parent=5 // pred_fallthru
        _
      %p185 = scmp.le.s32.totalorder 1, %s16
      %p186 = scmp.lt.s32.totalorder %s16, 3
      %p187 = pnand %p185, %p186
      %p188 = pneg %p187
      // Predicated region
      $region29: #{patch_merging.1} parent=5 // pred_check
        _
      $region30: #{patch_merging.1} parent=5 // pred_check_branch
        %190 = sbr.rel (%p187) target = $region32
      $region31: #{patch_merging.1} parent=5 // pred_region
        %s191 = ssub.s32 %s16, 1
        %s192 = sand.u32 %s43, 1
        %s193 = scalar_lea.sflag [#allocation3], %s192
        %s194 = sand.u32 %s43, 1
        %s195 = smul.addr %s194, 16
        %s196 = scalar_lea.vmem [#allocation2], %s195
        // Predicated region
        $region33: #{patch_merging.1} parent=31 // pred_check
          %p197 = pneg %p56
        $region34: #{patch_merging.1} parent=31 // pred_check_branch
          %199 = sbr.rel (%p197) target = $region36
        $region35: #{patch_merging.1} parent=31 // pred_region
          %201 = dma.done %s193, 256
        $region36: #{patch_merging.1} parent=31 // pred_fallthru
          _
        // Predicated region
        $region37: #{patch_merging.1} parent=31 // pred_check
          %p202 = pneg %p77
        $region38: #{patch_merging.1} parent=31 // pred_check_branch
          %204 = sbr.rel (%p202) target = $region40
        $region39: #{patch_merging.1} parent=31 // pred_region
          %206 = dma.done [#allocation6], 4096
        $region40: #{patch_merging.1} parent=31 // pred_fallthru
          _
        %s207 = sand.u32 %s43, 1
        %s208 = scalar_lea.sflag [#allocation3], %s207
        %s209 = sand.u32 %s43, 1
        %s210 = smul.addr %s209, 16
        %s211 = scalar_lea.vmem [#allocation2], %s210
        %p212 = pneg %p56
        %p213 = pneg %p53
        %p214 = pneg %p77
        %p215 = pneg %p74
        %p216 = pneg %p98
        %p217 = pneg %p95
        %p218 = pneg %p126
        %p219 = pneg %p123
        %s220 = sand.u32 %s113, 1
        %s221 = scalar_lea.sflag [#allocation4], %s220
        %s222 = sand.u32 %s113, 1
        %s223 = smul.addr %s222, 8
        %s224 = scalar_lea.vmem [#allocation7], %s223
        %v225 = vld [vmem:[%s196] sm:$0xff]
        %s226 = scalar_lea.vmem %s196, 8 [#allocation2]
        %v227 = vld [vmem:[%s226] sm:$0xff]
        %228 = vadd.xlane.f32.xlu0 %v225
        %v229 = vpop.xlane.xlu0 %228
        %230 = vadd.xlane.f32.xlu0 %v227
        %v231 = vpop.xlane.xlu0 %230
        %v232 = vadd.f32 %v229, %v231
        %v233 = vmul.f32 %v225, %v225
        %234 = vadd.xlane.f32.xlu0 %v233
        %v235 = vpop.xlane.xlu0 %234
        %v236 = vmul.f32 %v227, %v227
        %237 = vadd.xlane.f32.xlu0 %v236
        %v238 = vpop.xlane.xlu0 %237
        %v239 = vadd.f32 %v235, %v238
        %v240 = vmul.f32 %v232, 0.00390625
        %v241 = vmul.f32 %v239, 0.00390625
        %v242 = vmul.f32 %v240, %v240
        %v243 = vsub.f32 %v241, %v242
        %v244 = vmax.f32 %v243, 0.0
        %v245 = vadd.f32 %v244, 1e-05
        %v246 = vrsqrt.pop %v245
        %v247 = vmul.f32 %v246, %v245
        %v248 = vmul.f32 %v247, %v246
        %v249 = vmul.f32 0.5, %v248
        %v250 = vsub.f32 1.5, %v249
        %v251 = vmul.f32 %v246, %v250
        %vm252 = vweird.f32 %v245
        %vm253 = vweird.f32 %v246
        %vm254 = vmor %vm252, %vm253
        %v255 = vsel %vm254, %v246, %v251
        %v256 = vsub.f32 %v225, %v240
        %v257 = vmul.f32 %v256, %v255
        %v258 = vsub.f32 %v227, %v240
        %v259 = vmul.f32 %v258, %v255
        %v260 = vld [vmem:[#allocation5] sm:$0xff]
        %v261 = vld [vmem:[#allocation5 + $0x8] sm:$0xff]
        %v262 = vld [vmem:[#allocation5 + $0x10] sm:$0xff]
        %v263 = vld [vmem:[#allocation5 + $0x18] sm:$0xff]
        %v264 = vld [vmem:[#allocation5 + $0x20] sm:$0xff]
        %v265 = vld [vmem:[#allocation5 + $0x28] sm:$0xff]
        %v266 = vld [vmem:[#allocation5 + $0x30] sm:$0xff]
        %v267 = vld [vmem:[#allocation5 + $0x38] sm:$0xff]
        %v268 = vld [vmem:[#allocation5 + $0x40] sm:$0xff]
        %v269 = vld [vmem:[#allocation5 + $0x48] sm:$0xff]
        %v270 = vld [vmem:[#allocation5 + $0x50] sm:$0xff]
        %v271 = vld [vmem:[#allocation5 + $0x58] sm:$0xff]
        %v272 = vld [vmem:[#allocation5 + $0x60] sm:$0xff]
        %v273 = vld [vmem:[#allocation5 + $0x68] sm:$0xff]
        %v274 = vld [vmem:[#allocation5 + $0x70] sm:$0xff]
        %v275 = vld [vmem:[#allocation5 + $0x78] sm:$0xff]
        %v276 = vld [vmem:[#allocation5 + $0x80] sm:$0xff]
        %v277 = vld [vmem:[#allocation5 + $0x88] sm:$0xff]
        %v278 = vld [vmem:[#allocation5 + $0x90] sm:$0xff]
        %v279 = vld [vmem:[#allocation5 + $0x98] sm:$0xff]
        %v280 = vld [vmem:[#allocation5 + $0xa0] sm:$0xff]
        %v281 = vld [vmem:[#allocation5 + $0xa8] sm:$0xff]
        %v282 = vld [vmem:[#allocation5 + $0xb0] sm:$0xff]
        %v283 = vld [vmem:[#allocation5 + $0xb8] sm:$0xff]
        %v284 = vld [vmem:[#allocation5 + $0xc0] sm:$0xff]
        %v285 = vld [vmem:[#allocation5 + $0xc8] sm:$0xff]
        %v286 = vld [vmem:[#allocation5 + $0xd0] sm:$0xff]
        %v287 = vld [vmem:[#allocation5 + $0xd8] sm:$0xff]
        %v288 = vld [vmem:[#allocation5 + $0xe0] sm:$0xff]
        %v289 = vld [vmem:[#allocation5 + $0xe8] sm:$0xff]
        %v290 = vld [vmem:[#allocation5 + $0xf0] sm:$0xff]
        %v291 = vld [vmem:[#allocation5 + $0xf8] sm:$0xff]
        %v292 = vld [vmem:[%s2] sm:$0x1]
        %v294 = vperm.slane %v292, 0
        %296 = vmatpush.msra.mxu0 %v275
        %297 = vmatpush.msra.mxu0 %v274
        %298 = vmatpush.msra.mxu0 %v273
        %299 = vmatpush.msra.mxu0 %v272
        %300 = vmatpush.msra.mxu0 %v271
        %301 = vmatpush.msra.mxu0 %v270
        %302 = vmatpush.msra.mxu0 %v269
        %303 = vmatpush.msra.mxu0 %v268
        %304 = vmatpush.msra.mxu0 %v267
        %305 = vmatpush.msra.mxu0 %v266
        %306 = vmatpush.msra.mxu0 %v265
        %307 = vmatpush.msra.mxu0 %v264
        %308 = vmatpush.msra.mxu0 %v263
        %309 = vmatpush.msra.mxu0 %v262
        %310 = vmatpush.msra.mxu0 %v261
        %311 = vmatpush.msra.mxu0 %v260
        %312 = vmatmul.f32.gmra.mxu0 %v257
        %v313 = vpop.f32.mrf.mxu0
        %v314 = vadd.f32 %v294, %v313
        %315 = vdwg.mxu0
        %316 = vmatpush.msra.mxu0 %v291
        %317 = vmatpush.msra.mxu0 %v290
        %318 = vmatpush.msra.mxu0 %v289
        %319 = vmatpush.msra.mxu0 %v288
        %320 = vmatpush.msra.mxu0 %v287
        %321 = vmatpush.msra.mxu0 %v286
        %322 = vmatpush.msra.mxu0 %v285
        %323 = vmatpush.msra.mxu0 %v284
        %324 = vmatpush.msra.mxu0 %v283
        %325 = vmatpush.msra.mxu0 %v282
        %326 = vmatpush.msra.mxu0 %v281
        %327 = vmatpush.msra.mxu0 %v280
        %328 = vmatpush.msra.mxu0 %v279
        %329 = vmatpush.msra.mxu0 %v278
        %330 = vmatpush.msra.mxu0 %v277
        %331 = vmatpush.msra.mxu0 %v276
        %332 = vmatmul.f32.gmra.mxu0 %v259
        %v333 = vpop.f32.mrf.mxu0
        %v334 = vadd.f32 %v314, %v333
        %335 = vdwg.mxu0
        %336 = vst [vmem:[%s224] sm:$0xff] %v334
        %s337 = sand.u32 %s113, 1
        %s338 = scalar_lea.sflag [#allocation4], %s337
        %s339 = sand.u32 %s113, 1
        %s340 = smul.addr %s339, 8
        %s341 = scalar_lea.vmem [#allocation7], %s340
        // Predicated region
        $region41: #{patch_merging.1} parent=31 // pred_check
          %p342 = pneg %p123
        $region42: #{patch_merging.1} parent=31 // pred_check_branch
          %344 = sbr.rel (%p342) target = $region44
        $region43: #{patch_merging.1} parent=31 // pred_region
          %346 = vsyncadd %s338, 0
          %s347 = sadd.s32 %s26, %s25
          %s348 = smul.addr %s347, 8
          %s349 = scalar_lea.hbm %s3, %s348
          %s351 = sshll.u32 %s341, 4
          %s352 = int_to_ptr.vmem [resolvable:$true] %s351
          %s353 = sshll.u32 %s349, 4
          %s354 = int_to_ptr.hbm [resolvable:$true] %s353
          %356 = dma.vmem_to_hbm [thread:$0]  %s352, 128, %s354, %s338
        $region44: #{patch_merging.1} parent=31 // pred_fallthru
          _
      $region32: #{patch_merging.1} parent=5 // pred_fallthru
        _
      %p357 = scmp.le.s32.totalorder 2, %s16
      // Predicated region
      $region45: #{patch_merging.1} parent=5 // pred_check
        %p358 = pneg %p357
      $region46: #{patch_merging.1} parent=5 // pred_check_branch
        %360 = sbr.rel (%p358) target = $region48
      $region47: #{patch_merging.1} parent=5 // pred_region
        %s361 = ssub.s32 %s16, 2
        // Predicated region
        $region49: #{patch_merging.1} parent=47 // pred_check
          %p362 = pneg %p129
        $region50: #{patch_merging.1} parent=47 // pred_check_branch
          %364 = sbr.rel (%p362) target = $region52
        $region51: #{patch_merging.1} parent=47 // pred_region
          %s365 = sand.u32 %s114, 1
          %s366 = scalar_lea.sflag [#allocation4], %s365
          %s367 = sand.u32 %s114, 1
          %s368 = smul.addr %s367, 8
          %s369 = scalar_lea.vmem [#allocation7], %s368
          %371 = dma.done %s366, 128
        $region52: #{patch_merging.1} parent=47 // pred_fallthru
          _
      $region48: #{patch_merging.1} parent=5 // pred_fallthru
        _
    $region6: #{patch_merging.1} parent=1 // loop_footer
      %s20 = sadd.s32 1, %s16
    $region7: #{patch_merging.1} parent=1 // loop_footer_branch
      %15 = sbr.rel target = $region3
    $region8: #{patch_merging.1} parent=1 // loop_exit
      _
    %372 = vsyncpa [#allocation3], 1
    %s373 = scalar_lea.sflag [#allocation3], 1
    %374 = vsyncpa %s373, 1
    %375 = vsyncpa [#allocation6], 1
    %376 = vsyncpa [#allocation4], 1
    %s377 = scalar_lea.sflag [#allocation4], 1
    %378 = vsyncpa %s377, 1

</llo_original>
